<compile_context>
chip_gen: v7x
topology: tpu7x:2x2x1
jax: 0.10.0
libtpu: 0.0.40
codegen_flags: <defaults>
</compile_context>

<pallas_src>
import functools
import math

import jax
import jax.numpy as jnp
from jax.experimental import pallas as pl
from jax.experimental.pallas import tpu as pltpu


def _round_up(x, m):
    return ((x + m - 1) // m) * m


def _pick_tile(n, candidates, max_waste_frac=0.10, abs_waste=32):
    """Largest tile (descending candidates) whose zero-padding waste on `n`
    stays small. The last candidate is the hardware-required alignment and is
    always accepted."""
    limit = max(abs_waste, int(max_waste_frac * n))
    for t in candidates[:-1]:
        if _round_up(n, t) - n <= limit:
            return t
    return candidates[-1]


def _vmem_capacity_bytes():
    try:
        return int(pltpu.get_tpu_info().vmem_capacity_bytes)
    except Exception:
        return 64 << 20            # conservative: v7x per-core physical VMEM


def _vmem_limit(needed_bytes, budget):
    return int(min(max(int(needed_bytes * 1.4) + (4 << 20), 32 << 20), budget))


# --------------------------------------------------------------------------
# Stage 1 kernel: H = x @ W + b   (one row-tile of x per grid step, bf16 out)
# --------------------------------------------------------------------------
def _xw_bias_kernel(x_ref, w_ref, b_ref, h_ref):
    h = jnp.dot(x_ref[...], w_ref[...], preferred_element_type=jnp.float32)
    h_ref[...] = (h + b_ref[...].astype(jnp.float32)).astype(h_ref.dtype)


# --------------------------------------------------------------------------
# Stage 2 kernel: y = G @ H   (M-tile of G rows, K last, f32 accumulator)
#   h_resident=True : H block is the whole (n_k, f_pad) array with a constant
#                     index_map (fetched once per core); K-slice taken in-kernel.
#   h_resident=False: H streamed as (tk, f_pad) blocks (very-large-N fallback).
# --------------------------------------------------------------------------
def _g_matmul_kernel(g_ref, h_ref, o_ref, acc_ref, *, tk, h_resident):
    k = pl.program_id(1)

    @pl.when(k == 0)
    def _():
        acc_ref[...] = jnp.zeros_like(acc_ref)

    if h_resident:
        start = pl.multiple_of(k * tk, 128)
        h = h_ref[pl.ds(start, tk), :]
    else:
        h = h_ref[...]

    acc_ref[...] += jnp.dot(g_ref[...], h.astype(g_ref.dtype),
                            preferred_element_type=jnp.float32)

    @pl.when(k == pl.num_programs(1) - 1)
    def _():
        o_ref[...] = acc_ref[...].astype(o_ref.dtype)


def hgnn_conv(x, G, weight, bias, *, force_pallas=False):
    """Pallas implementation of HGNN_conv.forward: G @ (x @ weight + bias)."""
    N, in_ft = x.shape
    out_ft = weight.shape[1]
    assert weight.shape == (in_ft, out_ft)
    assert G.shape == (N, N)

    # Size-based dispatch: for tiny graphs the custom-call / grid / pad
    # overhead dominates — XLA's fused dot is strictly faster.
    if N <= 512 and not force_pallas:
        return G @ (x @ weight + bias)

    x_item = jnp.dtype(x.dtype).itemsize
    g_item = jnp.dtype(G.dtype).itemsize
    w_item = jnp.dtype(weight.dtype).itemsize
    h_dtype = jnp.bfloat16
    h_item = 2

    # ---- generation-aware VMEM budget (<= ~75% of physical) ---------------
    budget = int(_vmem_capacity_bytes() * 0.75)

    # ---- tiles / padded extents (padding decoupled from tile size) --------
    f_pad = _round_up(out_ft, 128)                      # lane-dense output width
    tk = _pick_tile(N, (512, 384, 256, 128))            # K tile (G cols / H rows)
    n_k = _round_up(N, tk)
    tm = _pick_tile(N, (512, 256, 128, 64, 32, 16, 8))  # M tile (G rows)
    n_m = _round_up(N, tm)
    # v7x megacore: keep >= 2 tiles on each "parallel" axis so both TCs work.
    while n_m // tm < 2 and tm >= 16 and tm % 16 == 0:
        tm //= 2
    th = tk                                             # stage-1 row tile (divides n_k)
    while n_k // th < 2 and th >= 16 and th % 16 == 0:
        th //= 2

    # ---- VMEM working sets (constant-index blocks counted at 2x since
    #      Pallas allocates double buffers for them by default) -------------
    s1_bytes = (2 * th * in_ft * x_item          # x row tiles
                + 2 * in_ft * f_pad * w_item     # W (resident, 2 buffers)
                + 2 * f_pad * 4                  # bias
                + 2 * th * f_pad * h_item)       # H output tiles
    s2_fixed = (2 * tm * tk * g_item             # G tiles
                + 2 * tm * f_pad * x_item        # output tiles
                + tm * f_pad * 4)                # f32 accumulator scratch
    s2_resident = s2_fixed + 2 * n_k * f_pad * h_item
    s2_streamed = s2_fixed + 2 * tk * f_pad * h_item
    h_resident = s2_resident + (4 << 20) <= budget
    s2_bytes = s2_resident if h_resident else s2_streamed

    if s2_streamed > budget:
        # TODO(synk): tile the out_ft dimension for very wide output layers.
        return G @ (x @ weight + bias)

    # ---- zero padding (exact: padded G columns are zero, so the bias that
    #      appears in padded H rows contributes nothing; pads sliced off) ---
    x_p = jnp.pad(x, ((0, n_k - N), (0, 0))) if n_k != N else x
    w_p = jnp.pad(weight, ((0, 0), (0, f_pad - out_ft))) if f_pad != out_ft else weight
    b_p = (jnp.pad(bias, (0, f_pad - out_ft)) if f_pad != out_ft else bias).reshape(1, f_pad)
    g_p = jnp.pad(G, ((0, n_m - N), (0, n_k - N))) if (n_m != N or n_k != N) else G

    # ---------------- Stage 1: H = x @ W + b  (bf16 intermediate) ----------
    if s1_bytes > budget:
        # TODO(synk): tile in_ft inside stage 1 for very large weight matrices.
        h = (x_p @ w_p + b_p).astype(h_dtype)
    else:
        h = pl.pallas_call(
            _xw_bias_kernel,
            out_shape=jax.ShapeDtypeStruct((n_k, f_pad), h_dtype),
            grid_spec=pltpu.PrefetchScalarGridSpec(
                num_scalar_prefetch=0,
                grid=(n_k // th,),
                in_specs=[
                    pl.BlockSpec((th, in_ft), lambda i: (i, 0)),     # x rows
                    pl.BlockSpec((in_ft, f_pad), lambda i: (0, 0)),  # W (resident)
                    pl.BlockSpec((1, f_pad), lambda i: (0, 0)),      # bias
                ],
                out_specs=pl.BlockSpec((th, f_pad), lambda i: (i, 0)),
            ),
            compiler_params=pltpu.CompilerParams(
                dimension_semantics=("parallel",),
                vmem_limit_bytes=_vmem_limit(s1_bytes, budget)),
        )(x_p, w_p, b_p)

    # ---------------- Stage 2: y = G @ H ------------------------------------
    if h_resident:
        # Constant index_map -> H DMA'd once per core, kept VMEM-resident.
        h_spec = pl.BlockSpec((n_k, f_pad), lambda i, k: (0, 0))
    else:
        h_spec = pl.BlockSpec((tk, f_pad), lambda i, k: (k, 0))

    y_p = pl.pallas_call(
        functools.partial(_g_matmul_kernel, tk=tk, h_resident=h_resident),
        out_shape=jax.ShapeDtypeStruct((n_m, f_pad), x.dtype),
        grid_spec=pltpu.PrefetchScalarGridSpec(
            num_scalar_prefetch=0,
            grid=(n_m // tm, n_k // tk),                 # (M rows, K) — K last
            in_specs=[
                pl.BlockSpec((tm, tk), lambda i, k: (i, k)),         # G tile
                h_spec,                                              # H
            ],
            out_specs=pl.BlockSpec((tm, f_pad), lambda i, k: (i, 0)),
            scratch_shapes=[pltpu.VMEM((tm, f_pad), jnp.float32)],
        ),
        compiler_params=pltpu.CompilerParams(
            dimension_semantics=("parallel", "arbitrary"),
            vmem_limit_bytes=_vmem_limit(s2_bytes, budget)),
    )(g_p, h)

    return y_p[:N, :out_ft]


def init_params(key, in_ft, out_ft, dtype=jnp.float32):
    """Deterministic parameter init matching the PyTorch module's __init__."""
    kw, kb = jax.random.split(key)
    std = math.sqrt(2.0 / (in_ft + out_ft))   # nn.init.xavier_normal_, gain=1
    weight = std * jax.random.normal(kw, (in_ft, out_ft), dtype=dtype)
    bias = jax.random.normal(kb, (out_ft,), dtype=dtype)   # nn.init.normal_
    return weight, bias


def _max_rel_err(y, y_ref):
    return float(jnp.max(jnp.abs(y - y_ref)) / (jnp.max(jnp.abs(y_ref)) + 1e-12))


if __name__ == "__main__":
    key = jax.random.PRNGKey(0)

    # (N, in_ft, out_ft, force_pallas, tolerance)
    cases = [
        (50,   20,  40, False, 1e-5),   # tiny -> XLA fast path
        (64,   32,  48, True,  2e-2),   # tiny, forced through the Pallas path
        (700,  80,  96, False, 2e-2),   # ragged N > 512 -> Pallas, padded tail
        (1024, 64, 128, False, 2e-2),   # aligned -> Pallas, 512x512 tiles
    ]
    for idx, (N, in_ft, out_ft, force, tol) in enumerate(cases):
        k_x, k_g, k_p = jax.random.split(jax.random.fold_in(key, idx), 3)
        x = jax.random.normal(k_x, (N, in_ft), dtype=jnp.float32)
        G = jax.random.normal(k_g, (N, N), dtype=jnp.float32)
        weight, bias = init_params(k_p, in_ft, out_ft)

        y = hgnn_conv(x, G, weight, bias, force_pallas=force)
        jax.block_until_ready(y)

        y_ref = G @ (x @ weight + bias)
        assert y.shape == (N, out_ft), (y.shape, (N, out_ft))
        err = _max_rel_err(y, y_ref)
        assert err < tol, (N, in_ft, out_ft, err)

    print("KERNEL_OK")
</pallas_src>

<mosaic_0001>
module attributes {stable_mosaic.version = 11 : i64} {
  func.func @_xw_bias_kernel(%arg0: i32, %arg1: memref<64x32xf32, #tpu.memory_space<vmem>>, %arg2: memref<32x128xf32, #tpu.memory_space<vmem>>, %arg3: memref<1x128xf32, #tpu.memory_space<vmem>>, %arg4: memref<64x128xbf16, #tpu.memory_space<vmem>>) attributes {dimension_semantics = [#tpu.dimension_semantics<parallel>], iteration_bounds = array<i64: 2>, scalar_prefetch = 0 : i64, scratch_operands = 0 : i64, tpu.core_type = #tpu.core_type<tc>, window_params = [{transform_indices = @transform_0, window_bounds = array<i64: 64, 32>}, {pipeline_mode = #tpu.pipeline_mode<synchronous>, transform_indices = @transform_1, window_bounds = array<i64: 32, 128>}, {pipeline_mode = #tpu.pipeline_mode<synchronous>, transform_indices = @transform_2, window_bounds = array<i64: 1, 128>}, {transform_indices = @transform_3, window_bounds = array<i64: 64, 128>}]} {
    %c0 = arith.constant 0 : index
    %c0_0 = arith.constant 0 : index
    %0 = vector.load %arg1[%c0, %c0_0] : memref<64x32xf32, #tpu.memory_space<vmem>>, vector<64x32xf32>
    %c0_1 = arith.constant 0 : index
    %c0_2 = arith.constant 0 : index
    %1 = vector.load %arg2[%c0_1, %c0_2] : memref<32x128xf32, #tpu.memory_space<vmem>>, vector<32x128xf32>
    %cst = arith.constant dense<0.000000e+00> : vector<64x128xf32>
    %2 = tpu.matmul %0, %1, %cst {dimension_numbers = #tpu.dot_dimension_numbers<[1], [0], [0], [1], [0, 0, 1, 1], [], []>} : vector<64x32xf32>, vector<32x128xf32>, vector<64x128xf32> -> vector<64x128xf32>
    %c0_3 = arith.constant 0 : index
    %c0_4 = arith.constant 0 : index
    %3 = vector.load %arg3[%c0_3, %c0_4] : memref<1x128xf32, #tpu.memory_space<vmem>>, vector<1x128xf32>
    %4 = vector.broadcast %3 : vector<1x128xf32> to vector<64x128xf32>
    %5 = arith.addf %2, %4 : vector<64x128xf32>
    %6 = arith.truncf %5 : vector<64x128xf32> to vector<64x128xbf16>
    %c0_5 = arith.constant 0 : index
    %c0_6 = arith.constant 0 : index
    %7 = vector.load %arg4[%c0_5, %c0_6] : memref<64x128xbf16, #tpu.memory_space<vmem>>, vector<64x128xbf16>
    tpu.vector_store %arg4[%c0_5, %c0_6], %6 {strides = array<i32>} : memref<64x128xbf16, #tpu.memory_space<vmem>>, vector<64x128xbf16>,
    return
  }
  func.func @transform_0(%arg0: i32) -> (i32, i32) {
    %c0_i32 = arith.constant 0 : i32
    %c0_i32_0 = arith.constant 0 : i32
    return %arg0, %c0_i32 : i32, i32
  }
  func.func @transform_1(%arg0: i32) -> (i32, i32) {
    %c0_i32 = arith.constant 0 : i32
    %c0_i32_0 = arith.constant 0 : i32
    %c0_i32_1 = arith.constant 0 : i32
    return %c0_i32, %c0_i32_0 : i32, i32
  }
  func.func @transform_2(%arg0: i32) -> (i32, i32) {
    %c0_i32 = arith.constant 0 : i32
    %c0_i32_0 = arith.constant 0 : i32
    %c0_i32_1 = arith.constant 0 : i32
    return %c0_i32, %c0_i32_0 : i32, i32
  }
  func.func @transform_3(%arg0: i32) -> (i32, i32) {
    %c0_i32 = arith.constant 0 : i32
    %c0_i32_0 = arith.constant 0 : i32
    return %arg0, %c0_i32 : i32, i32
  }
}

</mosaic_0001>

<llo_original>
// kernel: tpu_custom_call.1
$region0: #{tpu_custom_call.1}
  #allocation0 [shape = 'u32[]', space=smem, size = 0x4, offset = 0x4, fixed_abs, tag = 'smem constant byte address 0x4 - core index']
  #allocation1 [shape = 'u32[144,128]{1,0:T(1,128)}', space=vmem, size = 0x12000, scoped, tag = 'internal scratch']
  %s0 = inlined_call_operand.vmem [shape: f32[128,32], index: 0, kind: input, shape index: {}]
  %s1 = inlined_call_operand.vmem [shape: f32[32,128], index: 1, kind: input, shape index: {}]
  %s2 = inlined_call_operand.vmem [shape: f32[1,128], index: 2, kind: input, shape index: {}]
  %s3 = inlined_call_operand.hbm [shape: bf16[128,128], index: 3, kind: output, shape index: {}]
  %s4 = sld [smem:[#allocation0]]
  $region45: #{tpu_custom_call.1} parent=0
    _
  %s6 = ssub.s32 1, %s4
  %s7 = scalar_select 0, %s6, %s4
  $region1: #{tpu_custom_call.1} parent=0
    #allocation2 [shape = 'u8[32768]{0}', space=vmem, size = 0x8000, scoped, tag = 'output window, operand 0']
    #allocation3 [shape = 's32[2]{0}', space=sflag, size = 0x8, scoped, tag = 'scoped memory for tpu_custom_call.1']
    %8 = vsyncpa [#allocation3], 0
    %s9 = scalar_lea.sflag [#allocation3], 1
    %10 = vsyncpa %s9, 0
    loop: start=0, step=1, limit=4
    $region2: #{tpu_custom_call.1} parent=1 // loop_pre_header
      _
    $region3: #{tpu_custom_call.1} parent=1 // loop_header
      %s12 = sphi 0, %s16
      %p13 = scmp.ge.s32.totalorder %s12, 4
      %s22 = sphi 0, %s24
      %s25 = sphi 0, %s22
      %s26 = sphi 0, %s25
      %s42 = sphi 0, %s26
      %s46 = sphi 0, %s46
      %s48 = sphi 0, %s46
      %s49 = sphi 0, %s48
      %s63 = sphi 0, %s49
      %s67 = sphi 0, %s67
      %s69 = sphi 0, %s67
      %s70 = sphi 0, %s69
      %s84 = sphi 0, %s70
      %s90 = sphi 0, %s92
      %s93 = sphi 0, %s90
      %s94 = sphi 0, %s93
      %s110 = sphi 0, %s94
    $region4: #{tpu_custom_call.1} parent=1 // loop_header_branch
      %15 = sbr.rel (%p13) target = $region8
    $region5: #{tpu_custom_call.1} parent=1 // loop_body
      %s17 = ssub.s32 %s12, 1
      %s18 = ssub.s32 %s12, 2
      %s19 = sadd.s32 %s12, 1
      %s20 = ssub.s32 %s12, %s19
      %p21 = scmp.eq.s32.totalorder %s20, 0
      %s23 = sadd.s32 %s22, 1
      %s24 = scalar_select %p21, %s22, %s23
      %p27 = pneg %p21
      %p28 = scmp.eq.s32.totalorder %s12, 1
      %p29 = por %p27, %p28
      %p30 = scmp.ne.s32.totalorder %s22, %s25
      %p31 = scmp.eq.s32.totalorder %s12, 0
      %p32 = por %p30, %p31
      %p33 = scmp.ne.s32.totalorder %s22, %s25
      %p34 = scmp.eq.s32.totalorder %s17, 1
      %p35 = por %p33, %p34
      %p36 = scmp.ne.s32.totalorder %s25, %s26
      %p37 = scmp.eq.s32.totalorder %s17, 0
      %p38 = por %p36, %p37
      %p39 = scmp.ne.s32.totalorder %s25, %s26
      %p40 = scmp.eq.s32.totalorder %s18, 1
      %p41 = por %p39, %p40
      %p43 = scmp.ne.s32.totalorder %s26, %s42
      %p44 = scmp.eq.s32.totalorder %s18, 0
      %p45 = por %p43, %p44
      %s47 = sadd.s32 %s46, 1
      %p50 = scmp.eq.s32.totalorder %s12, 1
      %p51 = scmp.ne.s32.totalorder %s46, %s48
      %p52 = scmp.eq.s32.totalorder %s12, 0
      %p53 = por %p51, %p52
      %p54 = scmp.ne.s32.totalorder %s46, %s48
      %p55 = scmp.eq.s32.totalorder %s17, 1
      %p56 = por %p54, %p55
      %p57 = scmp.ne.s32.totalorder %s48, %s49
      %p58 = scmp.eq.s32.totalorder %s17, 0
      %p59 = por %p57, %p58
      %p60 = scmp.ne.s32.totalorder %s48, %s49
      %p61 = scmp.eq.s32.totalorder %s18, 1
      %p62 = por %p60, %p61
      %p64 = scmp.ne.s32.totalorder %s49, %s63
      %p65 = scmp.eq.s32.totalorder %s18, 0
      %p66 = por %p64, %p65
      %s68 = sadd.s32 %s67, 1
      %p71 = scmp.eq.s32.totalorder %s12, 1
      %p72 = scmp.ne.s32.totalorder %s67, %s69
      %p73 = scmp.eq.s32.totalorder %s12, 0
      %p74 = por %p72, %p73
      %p75 = scmp.ne.s32.totalorder %s67, %s69
      %p76 = scmp.eq.s32.totalorder %s17, 1
      %p77 = por %p75, %p76
      %p78 = scmp.ne.s32.totalorder %s69, %s70
      %p79 = scmp.eq.s32.totalorder %s17, 0
      %p80 = por %p78, %p79
      %p81 = scmp.ne.s32.totalorder %s69, %s70
      %p82 = scmp.eq.s32.totalorder %s18, 1
      %p83 = por %p81, %p82
      %p85 = scmp.ne.s32.totalorder %s70, %s84
      %p86 = scmp.eq.s32.totalorder %s18, 0
      %p87 = por %p85, %p86
      %s88 = ssub.s32 %s12, %s19
      %p89 = scmp.eq.s32.totalorder %s88, 0
      %s91 = sadd.s32 %s90, 1
      %s92 = scalar_select %p89, %s90, %s91
      %p95 = pneg %p89
      %p96 = scmp.eq.s32.totalorder %s12, 1
      %p97 = por %p95, %p96
      %p98 = scmp.ne.s32.totalorder %s90, %s93
      %p99 = scmp.eq.s32.totalorder %s12, 0
      %p100 = por %p98, %p99
      %p101 = scmp.ne.s32.totalorder %s90, %s93
      %p102 = scmp.eq.s32.totalorder %s17, 1
      %p103 = por %p101, %p102
      %p104 = scmp.ne.s32.totalorder %s93, %s94
      %p105 = scmp.eq.s32.totalorder %s17, 0
      %p106 = por %p104, %p105
      %p107 = scmp.ne.s32.totalorder %s93, %s94
      %p108 = scmp.eq.s32.totalorder %s18, 1
      %p109 = por %p107, %p108
      %p111 = scmp.ne.s32.totalorder %s94, %s110
      %p112 = scmp.eq.s32.totalorder %s18, 0
      %p113 = por %p111, %p112
      %p114 = scmp.le.s32.totalorder 1, %s12
      %p115 = scmp.lt.s32.totalorder %s12, 3
      %p116 = pnand %p114, %p115
      %p117 = pneg %p116
      // Predicated region
      $region9: #{tpu_custom_call.1} parent=5 // pred_check
        _
      $region10: #{tpu_custom_call.1} parent=5 // pred_check_branch
        %119 = sbr.rel (%p116) target = $region12
      $region11: #{tpu_custom_call.1} parent=5 // pred_region
        %s120 = ssub.s32 %s12, 1
        // Predicated region
        $region13: #{tpu_custom_call.1} parent=11 // pred_check
          %p121 = pneg %p59
        $region14: #{tpu_custom_call.1} parent=11 // pred_check_branch
          %123 = sbr.rel (%p121) target = $region16
        $region15: #{tpu_custom_call.1} parent=11 // pred_region
          _
        $region16: #{tpu_custom_call.1} parent=11 // pred_fallthru
          _
        // Predicated region
        $region17: #{tpu_custom_call.1} parent=11 // pred_check
          %p124 = pneg %p80
        $region18: #{tpu_custom_call.1} parent=11 // pred_check_branch
          %126 = sbr.rel (%p124) target = $region20
        $region19: #{tpu_custom_call.1} parent=11 // pred_region
          _
        $region20: #{tpu_custom_call.1} parent=11 // pred_fallthru
          _
      $region12: #{tpu_custom_call.1} parent=5 // pred_fallthru
        _
      %p127 = scmp.lt.s32.totalorder %s12, 2
      // Predicated region
      $region21: #{tpu_custom_call.1} parent=5 // pred_check
        %p128 = pneg %p127
      $region22: #{tpu_custom_call.1} parent=5 // pred_check_branch
        %130 = sbr.rel (%p128) target = $region24
      $region23: #{tpu_custom_call.1} parent=5 // pred_region
        // Predicated region
        $region25: #{tpu_custom_call.1} parent=23 // pred_check
          %p131 = pneg %p32
        $region26: #{tpu_custom_call.1} parent=23 // pred_check_branch
          %133 = sbr.rel (%p131) target = $region28
        $region27: #{tpu_custom_call.1} parent=23 // pred_region
          %s134 = smul.u32 8, %s12
          %p135 = scmp.lt.s32.totalorder %s134, 15
          %s136 = scalar_select %p135, %s134, 15
          %s137 = smul.addr %s136, 8
          %s138 = scalar_lea.vmem %s0, %s137
          %s139 = smul.u32 8, %s12
        $region28: #{tpu_custom_call.1} parent=23 // pred_fallthru
          _
      $region24: #{tpu_custom_call.1} parent=5 // pred_fallthru
        _
      %p140 = scmp.le.s32.totalorder 1, %s12
      %p141 = scmp.lt.s32.totalorder %s12, 3
      %p142 = pnand %p140, %p141
      %p143 = pneg %p142
      // Predicated region
      $region29: #{tpu_custom_call.1} parent=5 // pred_check
        _
      $region30: #{tpu_custom_call.1} parent=5 // pred_check_branch
        %145 = sbr.rel (%p142) target = $region32
      $region31: #{tpu_custom_call.1} parent=5 // pred_region
        %s146 = ssub.s32 %s12, 1
        %s147 = smul.u32 8, %s17
        %p148 = scmp.lt.s32.totalorder %s147, 15
        %s149 = scalar_select %p148, %s147, 15
        %s150 = smul.addr %s149, 8
        %s151 = scalar_lea.vmem %s0, %s150
        %p152 = pneg %p38
        %p153 = pneg %p35
        %p154 = pneg %p59
        %p155 = pneg %p56
        %p156 = pneg %p80
        %p157 = pneg %p77
        %p158 = pneg %p106
        %p159 = pneg %p103
        %s160 = sand.u32 %s93, 1
        %s161 = scalar_lea.sflag [#allocation3], %s160
        %s162 = sand.u32 %s93, 1
        %s163 = smul.addr %s162, 32
        %s164 = scalar_lea.vmem [#allocation2], %s163
        %s165 = smul.u32 8, %s17
        %p166 = scmp.lt.s32.totalorder %s165, 15
        %s167 = scalar_select %p166, %s165, 15
        %s168 = smul.addr %s167, 8
        %s169 = scalar_lea.vmem %s0, %s168
        %s170 = smul.u32 8, %s17
        %s171 = smul.u32 8, %s17
        %v172 = vld [vmem:[%s169] sm:$0xff]
        %v173 = vld [vmem:[%s169 + $0x8] sm:$0xff]
        %v174 = vld [vmem:[%s169 + $0x10] sm:$0xff]
        %v175 = vld [vmem:[%s169 + $0x18] sm:$0xff]
        %v176 = vld [vmem:[%s169 + $0x20] sm:$0xff]
        %v177 = vld [vmem:[%s169 + $0x28] sm:$0xff]
        %v178 = vld [vmem:[%s169 + $0x30] sm:$0xff]
        %v179 = vld [vmem:[%s169 + $0x38] sm:$0xff]
        %v180 = vld [vmem:[%s1] sm:$0xff]
        %v181 = vld [vmem:[%s1 + $0x8] sm:$0xff]
        %v182 = vld [vmem:[%s1 + $0x10] sm:$0xff]
        %v183 = vld [vmem:[%s1 + $0x18] sm:$0xff]
        %v184 = vld [vmem:[%s2] sm:$0x1]
        %v186 = vlaneseq
        %v187 = vshrl.u32 %v186, 7
        %v188 = vsub.s32 0, %v187
        %v189 = vrot.slane %v184, %v188
        %vm191 = vcmask 261120
        %v193 = vsel %vm191, %v172, 0
        %v196 = vsel %vm191, %v173, 0
        %v199 = vsel %vm191, %v174, 0
        %v202 = vsel %vm191, %v175, 0
        %v205 = vsel %vm191, %v176, 0
        %v208 = vsel %vm191, %v177, 0
        %v211 = vsel %vm191, %v178, 0
        %v214 = vsel %vm191, %v179, 0
        %216 = vmatprep.subr.mxu0 0.0
        %217 = vmatpush1.msra.mxu0 %v180
        %218 = vmatprep.subr.mxu0 0.0
        %219 = vmatpush1.msra.mxu0 %v181
        %220 = vmatprep.subr.mxu0 0.0
        %221 = vmatpush1.msra.mxu0 %v182
        %222 = vmatprep.subr.mxu0 0.0
        %223 = vmatpush1.msra.mxu0 %v183
        %224 = vmatprep.subr.mxu0 0.0
        %225 = vmatpush1.msra.mxu0 0.0
        %226 = vmatprep.subr.mxu0 0.0
        %227 = vmatpush1.msra.mxu0 0.0
        %228 = vmatprep.subr.mxu0 0.0
        %229 = vmatpush1.msra.mxu0 0.0
        %230 = vmatprep.subr.mxu0 0.0
        %231 = vmatpush1.msra.mxu0 0.0
        %232 = vmatprep.subr.mxu0 0.0
        %233 = vmatpush1.msra.mxu0 0.0
        %234 = vmatprep.subr.mxu0 0.0
        %235 = vmatpush1.msra.mxu0 0.0
        %236 = vmatprep.subr.mxu0 0.0
        %237 = vmatpush1.msra.mxu0 0.0
        %238 = vmatprep.subr.mxu0 0.0
        %239 = vmatpush1.msra.mxu0 0.0
        %240 = vmatprep.subr.mxu0 0.0
        %241 = vmatpush1.msra.mxu0 0.0
        %242 = vmatprep.subr.mxu0 0.0
        %243 = vmatpush1.msra.mxu0 0.0
        %244 = vmatprep.subr.mxu0 0.0
        %245 = vmatpush1.msra.mxu0 0.0
        %246 = vmatprep.subr.mxu0 0.0
        %247 = vmatpush1.msra.mxu0 0.0
        %248 = vmatprep.subr.mxu0 0.0
        %249 = vmatpush1.msra.mxu0 0.0
        %250 = vmatprep.subr.mxu0 0.0
        %251 = vmatpush1.msra.mxu0 0.0
        %252 = vmatprep.subr.mxu0 0.0
        %253 = vmatpush1.msra.mxu0 0.0
        %254 = vmatprep.subr.mxu0 0.0
        %255 = vmatpush1.msra.mxu0 0.0
        %256 = vmatprep.subr.mxu0 0.0
        %257 = vmatpush1.msra.mxu0 0.0
        %258 = vmatprep.subr.mxu0 0.0
        %259 = vmatpush1.msra.mxu0 0.0
        %260 = vmatprep.subr.mxu0 0.0
        %261 = vmatpush1.msra.mxu0 0.0
        %262 = vmatprep.subr.mxu0 0.0
        %263 = vmatpush1.msra.mxu0 0.0
        %264 = vmatprep.subr.mxu0 0.0
        %265 = vmatpush1.msra.mxu0 0.0
        %266 = vmatprep.subr.mxu0 0.0
        %267 = vmatpush1.msra.mxu0 0.0
        %268 = vmatprep.subr.mxu0 0.0
        %269 = vmatpush1.msra.mxu0 0.0
        %270 = vmatprep.subr.mxu0 0.0
        %271 = vmatpush1.msra.mxu0 0.0
        %272 = vmatprep.subr.mxu0 0.0
        %273 = vmatpush1.msra.mxu0 0.0
        %274 = vmatprep.subr.mxu0 0.0
        %275 = vmatpush1.msra.mxu0 0.0
        %276 = vmatprep.subr.mxu0 0.0
        %277 = vmatpush1.msra.mxu0 0.0
        %278 = vmatprep.subr.mxu0 0.0
        %279 = vmatpush1.msra.mxu0 0.0
        %280 = vmatprep.mubr.f32.mxu0 0.0
        %281 = vmatmul.mubr.f32.gmra.mrb[0].mxu0 %v193
        %v282 = vpop.f32.mrb[0].mxu0
        %v283 = vadd.f32 %v189, %v282
        %v284 = vpop.f32.mrb[0].mxu0
        %285 = vmatprep.mubr.f32.mxu0 0.0
        %286 = vmatmul.mubr.f32.gmra.mrb[0].mxu0 %v196
        %v287 = vpop.f32.mrb[0].mxu0
        %v288 = vadd.f32 %v189, %v287
        %v289 = vpop.f32.mrb[0].mxu0
        %290 = vmatprep.mubr.f32.mxu0 0.0
        %291 = vmatmul.mubr.f32.gmra.mrb[0].mxu0 %v199
        %v292 = vpop.f32.mrb[0].mxu0
        %v293 = vadd.f32 %v189, %v292
        %v294 = vpop.f32.mrb[0].mxu0
        %295 = vmatprep.mubr.f32.mxu0 0.0
        %296 = vmatmul.mubr.f32.gmra.mrb[0].mxu0 %v202
        %v297 = vpop.f32.mrb[0].mxu0
        %v298 = vadd.f32 %v189, %v297
        %v299 = vpop.f32.mrb[0].mxu0
        %300 = vmatprep.mubr.f32.mxu0 0.0
        %301 = vmatmul.mubr.f32.gmra.mrb[0].mxu0 %v205
        %v302 = vpop.f32.mrb[0].mxu0
        %v303 = vadd.f32 %v189, %v302
        %v304 = vpop.f32.mrb[0].mxu0
        %305 = vmatprep.mubr.f32.mxu0 0.0
        %306 = vmatmul.mubr.f32.gmra.mrb[0].mxu0 %v208
        %v307 = vpop.f32.mrb[0].mxu0
        %v308 = vadd.f32 %v189, %v307
        %v309 = vpop.f32.mrb[0].mxu0
        %310 = vmatprep.mubr.f32.mxu0 0.0
        %311 = vmatmul.mubr.f32.gmra.mrb[0].mxu0 %v211
        %v312 = vpop.f32.mrb[0].mxu0
        %v313 = vadd.f32 %v189, %v312
        %v314 = vpop.f32.mrb[0].mxu0
        %315 = vmatprep.mubr.f32.mxu0 0.0
        %316 = vmatmul.mubr.f32.gmra.mrb[0].mxu0 %v214
        %v317 = vpop.f32.mrb[0].mxu0
        %v318 = vadd.f32 %v189, %v317
        %v319 = vpop.f32.mrb[0].mxu0
        %320 = vdwg.mxu0
        %v321 = vpack.c.bf16 %v288, %v283
        %v322 = vpack.c.bf16 %v298, %v293
        %v323 = vpack.c.bf16 %v308, %v303
        %v324 = vpack.c.bf16 %v318, %v313
        %v329 = vunpack.c.l.b16 %v321
        %v330 = vunpack.c.h.b16 %v321
        %v331 = vunpack.c.l.b16 %v322
        %v332 = vunpack.c.h.b16 %v322
        %v333 = vunpack.c.l.b16 %v323
        %v334 = vunpack.c.h.b16 %v323
        %v335 = vunpack.c.l.b16 %v324
        %v336 = vunpack.c.h.b16 %v324
        %v337 = vpack.c.b16 %v329, %v329
        %v338 = vpack.c.b16 %v330, %v330
        %v339 = vpack.c.b16 %v331, %v331
        %v340 = vpack.c.b16 %v332, %v332
        %v341 = vpack.c.b16 %v333, %v333
        %v342 = vpack.c.b16 %v334, %v334
        %v343 = vpack.c.b16 %v335, %v335
        %v344 = vpack.c.b16 %v336, %v336
        %353 = vst [vmem:[%s164] sm:$0xf] %v337
        %354 = vst [vmem:[%s164 + $0x4] sm:$0xf] %v338
        %355 = vst [vmem:[%s164 + $0x8] sm:$0xf] %v339
        %356 = vst [vmem:[%s164 + $0xc] sm:$0xf] %v340
        %357 = vst [vmem:[%s164 + $0x10] sm:$0xf] %v341
        %358 = vst [vmem:[%s164 + $0x14] sm:$0xf] %v342
        %359 = vst [vmem:[%s164 + $0x18] sm:$0xf] %v343
        %360 = vst [vmem:[%s164 + $0x1c] sm:$0xf] %v344
        %s361 = sand.u32 %s93, 1
        %s362 = scalar_lea.sflag [#allocation3], %s361
        %s363 = sand.u32 %s93, 1
        %s364 = smul.addr %s363, 32
        %s365 = scalar_lea.vmem [#allocation2], %s364
        // Predicated region
        $region33: #{tpu_custom_call.1} parent=31 // pred_check
          %p366 = pneg %p103
        $region34: #{tpu_custom_call.1} parent=31 // pred_check_branch
          %368 = sbr.rel (%p366) target = $region36
        $region35: #{tpu_custom_call.1} parent=31 // pred_region
          %s369 = smul.u32 8, %s17
          %s371 = ssub.s32 512, 512
          %372 = vsyncadd %s362, %s371
          %s373 = smul.addr %s369, 64
          %s374 = scalar_lea.hbm %s3, %s373
          %s375 = sshll.u32 %s365, 4
          %s376 = int_to_ptr.vmem [resolvable:$true] %s375
          %381 = dma.vmem_to_hbm [thread:$0]  %s376, 512, %s374, %s362, 64, 64, 4
        $region36: #{tpu_custom_call.1} parent=31 // pred_fallthru
          _
      $region32: #{tpu_custom_call.1} parent=5 // pred_fallthru
        _
      %p382 = scmp.le.s32.totalorder 2, %s12
      // Predicated region
      $region37: #{tpu_custom_call.1} parent=5 // pred_check
        %p383 = pneg %p382
      $region38: #{tpu_custom_call.1} parent=5 // pred_check_branch
        %385 = sbr.rel (%p383) target = $region40
      $region39: #{tpu_custom_call.1} parent=5 // pred_region
        %s386 = ssub.s32 %s12, 2
        // Predicated region
        $region41: #{tpu_custom_call.1} parent=39 // pred_check
          %p387 = pneg %p109
        $region42: #{tpu_custom_call.1} parent=39 // pred_check_branch
          %389 = sbr.rel (%p387) target = $region44
        $region43: #{tpu_custom_call.1} parent=39 // pred_region
          %s390 = sand.u32 %s94, 1
          %s391 = scalar_lea.sflag [#allocation3], %s390
          %s392 = sand.u32 %s94, 1
          %s393 = smul.addr %s392, 32
          %s394 = scalar_lea.vmem [#allocation2], %s393
          %395 = dma.done %s391, 512
        $region44: #{tpu_custom_call.1} parent=39 // pred_fallthru
          _
      $region40: #{tpu_custom_call.1} parent=5 // pred_fallthru
        _
    $region6: #{tpu_custom_call.1} parent=1 // loop_footer
      %s16 = sadd.s32 1, %s12
    $region7: #{tpu_custom_call.1} parent=1 // loop_footer_branch
      %11 = sbr.rel target = $region3
    $region8: #{tpu_custom_call.1} parent=1 // loop_exit
      _
    %396 = vsyncpa [#allocation3], 1
    %s397 = scalar_lea.sflag [#allocation3], 1
    %398 = vsyncpa %s397, 1

</llo_original>
